<compile_context>
chip_gen: v7x
topology: tpu7x:2x2x1
jax: 0.10.0
libtpu: 0.0.40
codegen_flags: <defaults>
</compile_context>

<pallas_src>
import functools
import math

import jax
import jax.numpy as jnp
from jax import lax
from jax.experimental import pallas as pl
from jax.experimental.pallas import tpu as pltpu


_VMEM_LIMIT = 32 * 1024 * 1024  # safe on v5e/v6e (128 MiB) and v7x (64 MiB)
_SQRT_2_OVER_PI = math.sqrt(2.0 / math.pi)


def _gelu(y):
    # TODO(synk): UNITER/torch GELU is the erf form; tanh approximation used
    # here (lowers to the EUP on all TPU generations).
    return 0.5 * y * (1.0 + jnp.tanh(_SQRT_2_OVER_PI * (y + 0.044715 * y * y * y)))


def _apply_act(y, act):
    if act == "gelu":
        return _gelu(y)
    if act == "tanh":
        return jnp.tanh(y)
    return y


def _ln(y, g, b, eps):
    mu = jnp.mean(y, axis=-1, keepdims=True)
    yc = y - mu
    var = jnp.mean(yc * yc, axis=-1, keepdims=True)
    return yc * lax.rsqrt(var + eps) * g + b


def _pick_block(dim, target, align):
    """Largest block <= target that is a multiple of `align` and divides `dim`,
    falling back to the full dimension (block == array dim is always legal)."""
    if dim <= target:
        return dim
    b = (target // align) * align
    while b >= align:
        if dim % b == 0:
            return b
        b -= align
    return dim


def _cparams(sem):
    return pltpu.CompilerParams(dimension_semantics=sem,
                                vmem_limit_bytes=_VMEM_LIMIT)


# ----------------------------------------------------------------------------
# Tiled linear:  y = act(x @ w + b)         (grid over M, N, K; f32 accumulator)
# ----------------------------------------------------------------------------
def _linear_kernel(x_ref, w_ref, b_ref, o_ref, acc_ref, *, act, k_steps):
    @pl.when(pl.program_id(2) == 0)
    def _():
        acc_ref[...] = jnp.zeros_like(acc_ref)

    acc_ref[...] += jnp.dot(
        x_ref[...].astype(jnp.bfloat16),
        w_ref[...].astype(jnp.bfloat16),
        preferred_element_type=jnp.float32,
    )

    @pl.when(pl.program_id(2) == k_steps - 1)
    def _():
        y = acc_ref[...] + b_ref[...].astype(jnp.float32)
        o_ref[...] = _apply_act(y, act).astype(o_ref.dtype)


def linear(x, w, b, act="none", *, bm=256, bn=512, bk=512):
    """x: [M, K] f32, w: [K, N] (bf16 storage), b: [N] f32 -> [M, N] f32."""
    M, K = x.shape
    N = w.shape[1]
    bm = _pick_block(M, bm, 8)
    bn = _pick_block(N, bn, 128)
    bk = _pick_block(K, bk, 128)
    grid = (M // bm, N // bn, K // bk)
    return pl.pallas_call(
        functools.partial(_linear_kernel, act=act, k_steps=grid[2]),
        out_shape=jax.ShapeDtypeStruct((M, N), jnp.float32),
        grid=grid,
        in_specs=[
            pl.BlockSpec((bm, bk), lambda i, j, k: (i, k)),
            pl.BlockSpec((bk, bn), lambda i, j, k: (k, j)),
            pl.BlockSpec((1, bn), lambda i, j, k: (0, j)),
        ],
        out_specs=pl.BlockSpec((bm, bn), lambda i, j, k: (i, j)),
        scratch_shapes=[pltpu.VMEM((bm, bn), jnp.float32)],
        compiler_params=_cparams(("parallel", "parallel", "arbitrary")),
    )(x, w, b.reshape(1, N))


# ----------------------------------------------------------------------------
# Fused linear + bias + residual + LayerNorm (M-tiled; LN needs full rows)
# ----------------------------------------------------------------------------
def _linear_res_ln_kernel(x_ref, w_ref, b_ref, r_ref, g_ref, d_ref, o_ref, *, eps):
    y = jnp.dot(x_ref[...].astype(jnp.bfloat16),
                w_ref[...].astype(jnp.bfloat16),
                preferred_element_type=jnp.float32)
    y = y + b_ref[...].astype(jnp.float32) + r_ref[...].astype(jnp.float32)
    o_ref[...] = _ln(y, g_ref[...].astype(jnp.float32),
                     d_ref[...].astype(jnp.float32), eps).astype(o_ref.dtype)


def linear_residual_layernorm(x, w, b, res, gamma, beta, eps=1e-12, *, bm=256):
    M, K = x.shape
    N = w.shape[1]
    bm = _pick_block(M, bm, 8)
    grid = (M // bm,)
    # TODO(synk): K is not tiled here (LayerNorm needs full output rows); fine
    # for UNITER-scale K, revisit for K >> 4096.
    return pl.pallas_call(
        functools.partial(_linear_res_ln_kernel, eps=eps),
        out_shape=jax.ShapeDtypeStruct((M, N), jnp.float32),
        grid=grid,
        in_specs=[
            pl.BlockSpec((bm, K), lambda i: (i, 0)),
            pl.BlockSpec((K, N), lambda i: (0, 0)),
            pl.BlockSpec((1, N), lambda i: (0, 0)),
            pl.BlockSpec((bm, N), lambda i: (i, 0)),
            pl.BlockSpec((1, N), lambda i: (0, 0)),
            pl.BlockSpec((1, N), lambda i: (0, 0)),
        ],
        out_specs=pl.BlockSpec((bm, N), lambda i: (i, 0)),
        compiler_params=_cparams(("parallel",)),
    )(x, w, b.reshape(1, N), res, gamma.reshape(1, N), beta.reshape(1, N))


# ----------------------------------------------------------------------------
# Standalone LayerNorm (text embeddings)
# ----------------------------------------------------------------------------
def _layernorm_kernel(x_ref, g_ref, b_ref, o_ref, *, eps):
    x = x_ref[...].astype(jnp.float32)
    o_ref[...] = _ln(x, g_ref[...], b_ref[...], eps).astype(o_ref.dtype)


def layernorm(x, g, b, eps=1e-12, *, bm=256):
    M, N = x.shape
    bm = _pick_block(M, bm, 8)
    grid = (M // bm,)
    return pl.pallas_call(
        functools.partial(_layernorm_kernel, eps=eps),
        out_shape=jax.ShapeDtypeStruct((M, N), jnp.float32),
        grid=grid,
        in_specs=[
            pl.BlockSpec((bm, N), lambda i: (i, 0)),
            pl.BlockSpec((1, N), lambda i: (0, 0)),
            pl.BlockSpec((1, N), lambda i: (0, 0)),
        ],
        out_specs=pl.BlockSpec((bm, N), lambda i: (i, 0)),
        compiler_params=_cparams(("parallel",)),
    )(x, g.reshape(1, N), b.reshape(1, N))


# ----------------------------------------------------------------------------
# Multi-head attention: all heads of one batch element per grid step,
# consuming the un-transposed fused QKV tensor [B, S, 3H].
# ----------------------------------------------------------------------------
def _attn_kernel(qkv_ref, bias_ref, o_ref, *, num_heads, scale):
    qkv = qkv_ref[0]                       # (S, 3H) f32
    H = qkv.shape[-1] // 3
    Dh = H // num_heads
    bias = bias_ref[0]                     # (1, S) additive key mask

    outs = []
    for h in range(num_heads):             # static unrolled head loop
        q = qkv[:, h * Dh:(h + 1) * Dh].astype(jnp.bfloat16)
        k = qkv[:, H + h * Dh:H + (h + 1) * Dh].astype(jnp.bfloat16)
        v = qkv[:, 2 * H + h * Dh:2 * H + (h + 1) * Dh].astype(jnp.bfloat16)
        s = lax.dot_general(q, k, (((1,), (1,)), ((), ())),
                            preferred_element_type=jnp.float32) * scale
        s = s + bias
        s = s - jnp.max(s, axis=-1, keepdims=True)
        p = jnp.exp(s)
        p = p * pl.reciprocal(jnp.sum(p, axis=-1, keepdims=True), approx=True)
        outs.append(jnp.dot(p.astype(jnp.bfloat16), v,
                            preferred_element_type=jnp.float32))
    # lane-dense single store of all heads
    o_ref[0] = jnp.concatenate(outs, axis=-1).astype(o_ref.dtype)


def mha_attention(qkv, attn_bias, num_heads):
    """qkv: [B, S, 3H]; attn_bias: [B, 1, S] additive (-10000 on pad)."""
    B, S, H3 = qkv.shape
    H = H3 // 3
    Dh = H // num_heads
    scale = 1.0 / math.sqrt(Dh)
    return pl.pallas_call(
        functools.partial(_attn_kernel, num_heads=num_heads, scale=scale),
        out_shape=jax.ShapeDtypeStruct((B, S, H), jnp.float32),
        grid=(B,),
        in_specs=[
            pl.BlockSpec((1, S, H3), lambda b: (b, 0, 0)),
            pl.BlockSpec((1, 1, S), lambda b: (b, 0, 0)),
        ],
        out_specs=pl.BlockSpec((1, S, H), lambda b: (b, 0, 0)),
        compiler_params=_cparams(("parallel",)),
    )(qkv, attn_bias)


# ----------------------------------------------------------------------------
# Fused image-embedding branch:
#   LN(imgLinear(x)) + LN(posLinear(x)) + type_emb  ->  LN(...)
# ----------------------------------------------------------------------------
def _img_emb_kernel(x_ref, wi_ref, bi_ref, gi_ref, di_ref,
                    wp_ref, bp_ref, gp_ref, dp_ref,
                    te_ref, go_ref, do_ref, o_ref, *, eps):
    x = x_ref[...].astype(jnp.bfloat16)
    a = jnp.dot(x, wi_ref[...].astype(jnp.bfloat16),
                preferred_element_type=jnp.float32) + bi_ref[...]
    a = _ln(a, gi_ref[...], di_ref[...], eps)
    p = jnp.dot(x, wp_ref[...].astype(jnp.bfloat16),
                preferred_element_type=jnp.float32) + bp_ref[...]
    p = _ln(p, gp_ref[...], dp_ref[...], eps)
    y = a + p + te_ref[...]
    o_ref[...] = _ln(y, go_ref[...], do_ref[...], eps).astype(o_ref.dtype)


def image_embeddings(img_flat, p, eps=1e-12, *, bm=256):
    M, D = img_flat.shape
    H = p["img_w"].shape[1]
    bm = _pick_block(M, bm, 8)
    grid = (M // bm,)
    row = lambda a: a.reshape(1, -1)
    return pl.pallas_call(
        functools.partial(_img_emb_kernel, eps=eps),
        out_shape=jax.ShapeDtypeStruct((M, H), jnp.float32),
        grid=grid,
        in_specs=[
            pl.BlockSpec((bm, D), lambda i: (i, 0)),   # x
            pl.BlockSpec((D, H), lambda i: (0, 0)),    # img_w
            pl.BlockSpec((1, H), lambda i: (0, 0)),    # img_b
            pl.BlockSpec((1, H), lambda i: (0, 0)),    # img_ln_g
            pl.BlockSpec((1, H), lambda i: (0, 0)),    # img_ln_b
            pl.BlockSpec((D, H), lambda i: (0, 0)),    # pos_w
            pl.BlockSpec((1, H), lambda i: (0, 0)),    # pos_b
            pl.BlockSpec((1, H), lambda i: (0, 0)),    # pos_ln_g
            pl.BlockSpec((1, H), lambda i: (0, 0)),    # pos_ln_b
            pl.BlockSpec((1, H), lambda i: (0, 0)),    # type_emb[1]
            pl.BlockSpec((1, H), lambda i: (0, 0)),    # img_out_ln_g
            pl.BlockSpec((1, H), lambda i: (0, 0)),    # img_out_ln_b
        ],
        out_specs=pl.BlockSpec((bm, H), lambda i: (i, 0)),
        compiler_params=_cparams(("parallel",)),
    )(img_flat, p["img_w"], row(p["img_b"]), row(p["img_ln_g"]), row(p["img_ln_b"]),
      p["pos_w"], row(p["pos_b"]), row(p["pos_ln_g"]), row(p["pos_ln_b"]),
      row(p["type_emb"][1]), row(p["img_out_ln_g"]), row(p["img_out_ln_b"]))


# ----------------------------------------------------------------------------
# Fused pooler + VQA head: tanh(cls@Wp+bp) -> GELU(·@W1+b1) -> LN -> ·@W2+b2
# Logits kept lane-dense (padded to a multiple of 128) inside the kernel.
# ----------------------------------------------------------------------------
def _head_kernel(cls_ref, pw_ref, pb_ref, w1_ref, b1_ref, g_ref, d_ref,
                 w2_ref, b2_ref, o_ref, *, eps):
    x = cls_ref[...].astype(jnp.bfloat16)
    pooled = jnp.tanh(jnp.dot(x, pw_ref[...].astype(jnp.bfloat16),
                              preferred_element_type=jnp.float32) + pb_ref[...])
    h = _gelu(jnp.dot(pooled.astype(jnp.bfloat16), w1_ref[...].astype(jnp.bfloat16),
                      preferred_element_type=jnp.float32) + b1_ref[...])
    h = _ln(h, g_ref[...], d_ref[...], eps)
    logits = jnp.dot(h.astype(jnp.bfloat16), w2_ref[...].astype(jnp.bfloat16),
                     preferred_element_type=jnp.float32) + b2_ref[...]
    o_ref[...] = logits.astype(o_ref.dtype)


def vqa_head(cls, p, num_labels, eps=1e-12):
    B, H = cls.shape
    H2 = p["vqa_w1"].shape[1]
    Np = ((num_labels + 127) // 128) * 128            # lane-dense output
    w2p = jnp.zeros((H2, Np), p["vqa_w2"].dtype).at[:, :num_labels].set(p["vqa_w2"])
    b2p = jnp.zeros((1, Np), jnp.float32).at[0, :num_labels].set(p["vqa_b2"])
    logits = pl.pallas_call(
        functools.partial(_head_kernel, eps=eps),
        out_shape=jax.ShapeDtypeStruct((B, Np), jnp.float32),
        grid=(1,),
        in_specs=[
            pl.BlockSpec((B, H), lambda i: (0, 0)),
            pl.BlockSpec((H, H), lambda i: (0, 0)),
            pl.BlockSpec((1, H), lambda i: (0, 0)),
            pl.BlockSpec((H, H2), lambda i: (0, 0)),
            pl.BlockSpec((1, H2), lambda i: (0, 0)),
            pl.BlockSpec((1, H2), lambda i: (0, 0)),
            pl.BlockSpec((1, H2), lambda i: (0, 0)),
            pl.BlockSpec((H2, Np), lambda i: (0, 0)),
            pl.BlockSpec((1, Np), lambda i: (0, 0)),
        ],
        out_specs=pl.BlockSpec((B, Np), lambda i: (0, 0)),
        compiler_params=_cparams(("arbitrary",)),
    )(cls, p["pool_w"], p["pool_b"].reshape(1, H),
      p["vqa_w1"], p["vqa_b1"].reshape(1, H2),
      p["vqa_ln_g"].reshape(1, H2), p["vqa_ln_b"].reshape(1, H2),
      w2p, b2p)
    return logits[:, :num_labels]


# ----------------------------------------------------------------------------
# Parameter init (deterministic, synthetic). Matmul weights stored in bf16
# (MXU-native); biases / LN params / embedding tables stay f32.
# ----------------------------------------------------------------------------
def init_params(key, cfg):
    H = cfg["hidden"]
    I = cfg["intermediate"]
    D = cfg["img_dim"]

    def dense(k, fi, fo):
        return (0.02 * jax.random.normal(k, (fi, fo), jnp.float32)).astype(jnp.bfloat16)

    keys = iter(jax.random.split(key, 256))
    p = {
        # text embeddings
        "word_emb": 0.02 * jax.random.normal(next(keys), (cfg["vocab"], H), jnp.float32),
        "pos_emb": 0.02 * jax.random.normal(next(keys), (cfg["max_pos"], H), jnp.float32),
        "type_emb": 0.02 * jax.random.normal(next(keys), (2, H), jnp.float32),
        "txt_ln_g": jnp.ones((H,), jnp.float32),
        "txt_ln_b": jnp.zeros((H,), jnp.float32),
        # image embeddings (img_feat and img_pos_feat are both pixel_values)
        "img_w": dense(next(keys), D, H), "img_b": jnp.zeros((H,), jnp.float32),
        "img_ln_g": jnp.ones((H,), jnp.float32), "img_ln_b": jnp.zeros((H,), jnp.float32),
        "pos_w": dense(next(keys), D, H), "pos_b": jnp.zeros((H,), jnp.float32),
        "pos_ln_g": jnp.ones((H,), jnp.float32), "pos_ln_b": jnp.zeros((H,), jnp.float32),
        "img_out_ln_g": jnp.ones((H,), jnp.float32),
        "img_out_ln_b": jnp.zeros((H,), jnp.float32),
        # pooler
        "pool_w": dense(next(keys), H, H), "pool_b": jnp.zeros((H,), jnp.float32),
        # vqa head: Linear(H, 2H) -> GELU -> LayerNorm(2H) -> Linear(2H, labels)
        "vqa_w1": dense(next(keys), H, 2 * H), "vqa_b1": jnp.zeros((2 * H,), jnp.float32),
        "vqa_ln_g": jnp.ones((2 * H,), jnp.float32),
        "vqa_ln_b": jnp.zeros((2 * H,), jnp.float32),
        "vqa_w2": dense(next(keys), 2 * H, cfg["num_labels"]),
        "vqa_b2": jnp.zeros((cfg["num_labels"],), jnp.float32),
        "layers": [],
    }
    for _ in range(cfg["layers"]):
        p["layers"].append(
            {
                # fused QKV projection: [H, 3H]
                "qkv_w": dense(next(keys), H, 3 * H),
                "qkv_b": jnp.zeros((3 * H,), jnp.float32),
                "o_w": dense(next(keys), H, H), "o_b": jnp.zeros((H,), jnp.float32),
                "ln1_g": jnp.ones((H,), jnp.float32), "ln1_b": jnp.zeros((H,), jnp.float32),
                "ff1_w": dense(next(keys), H, I), "ff1_b": jnp.zeros((I,), jnp.float32),
                "ff2_w": dense(next(keys), I, H), "ff2_b": jnp.zeros((H,), jnp.float32),
                "ln2_g": jnp.ones((H,), jnp.float32), "ln2_b": jnp.zeros((H,), jnp.float32),
            }
        )
    return p


# ----------------------------------------------------------------------------
# Forward pass
# ----------------------------------------------------------------------------
def encoder_layer(x, attn_bias, p, num_heads):
    B, S, H = x.shape
    xf = x.reshape(B * S, H)

    qkv = linear(xf, p["qkv_w"], p["qkv_b"]).reshape(B, S, 3 * H)   # fused Q/K/V
    ctx = mha_attention(qkv, attn_bias, num_heads).reshape(B * S, H)

    # attention output proj + residual + post-LN, fused
    x1 = linear_residual_layernorm(ctx, p["o_w"], p["o_b"], xf, p["ln1_g"], p["ln1_b"])
    # FFN
    inter = linear(x1, p["ff1_w"], p["ff1_b"], act="gelu")
    x2 = linear_residual_layernorm(inter, p["ff2_w"], p["ff2_b"], x1,
                                   p["ln2_g"], p["ln2_b"])
    return x2.reshape(B, S, H)


def multimodal_vqa_forward(params, cfg, input_ids, pixel_values, attention_mask,
                           labels=None):
    H = cfg["hidden"]
    B, T = input_ids.shape
    R = pixel_values.shape[1]
    D = pixel_values.shape[2]

    # ----- UniterTextEmbeddings: word + position + token_type, then LayerNorm
    position_ids = jnp.arange(T, dtype=jnp.int32)            # torch.arange(...)
    we = params["word_emb"][input_ids]                        # gather = glue
    pe = params["pos_emb"][position_ids][None, :, :]
    te = params["type_emb"][0][None, None, :]                 # token_type_ids == 0
    txt = (we + pe + te).reshape(B * T, H)
    txt = layernorm(txt, params["txt_ln_g"], params["txt_ln_b"]).reshape(B, T, H)

    # ----- UniterImageEmbeddings (fully fused): img_feat == img_pos_feat
    img = image_embeddings(pixel_values.reshape(B * R, D), params).reshape(B, R, H)

    # ----- concat text then image tokens, run encoder
    x = jnp.concatenate([txt, img], axis=1)                   # [B, S, H], S = T + R
    bias = (1.0 - attention_mask.astype(jnp.float32)) * -10000.0
    bias = bias[:, None, :]                                   # [B, 1, S]
    for lp in params["layers"]:
        x = encoder_layer(x, bias, lp, cfg["heads"])

    # ----- pooler (first token) + vqa head, fused into one kernel
    cls = x[:, 0, :]                                          # [B, H]
    logits = vqa_head(cls, params, cfg["num_labels"])

    out = {"logits": logits}
    # TODO(synk): CrossEntropyLoss branch (labels is None in this synthetic run).
    return out


# ----------------------------------------------------------------------------
if __name__ == "__main__":
    cfg = dict(
        hidden=32, heads=2, layers=4, intermediate=64,
        vocab=64, max_pos=64, img_dim=16, num_labels=8,
    )
    B, T, R = 2, 8, 8

    key = jax.random.PRNGKey(0)
    pkey, ikey, xkey = jax.random.split(key, 3)

    params = init_params(pkey, cfg)
    input_ids = jax.random.randint(ikey, (B, T), 0, cfg["vocab"], dtype=jnp.int32)
    pixel_values = jax.random.normal(xkey, (B, R, cfg["img_dim"]), jnp.float32)
    # combined text+image attention mask (pad out the last 2 text tokens of batch 1)
    attention_mask = jnp.ones((B, T + R), jnp.int32).at[1, T - 2:T].set(0)

    out = multimodal_vqa_forward(params, cfg, input_ids, pixel_values, attention_mask)
    logits = jax.block_until_ready(out["logits"])

    assert logits.shape == (B, cfg["num_labels"])
    assert bool(jnp.all(jnp.isfinite(logits)))
    print("KERNEL_OK")
</pallas_src>

<mosaic_0001>
module attributes {stable_mosaic.version = 11 : i64} {
  func.func @_layernorm_kernel(%arg0: i32, %arg1: memref<16x32xf32, #tpu.memory_space<vmem>>, %arg2: memref<1x32xf32, #tpu.memory_space<vmem>>, %arg3: memref<1x32xf32, #tpu.memory_space<vmem>>, %arg4: memref<16x32xf32, #tpu.memory_space<vmem>>) attributes {dimension_semantics = [#tpu.dimension_semantics<parallel>], iteration_bounds = array<i64: 1>, scalar_prefetch = 0 : i64, scratch_operands = 0 : i64, tpu.core_type = #tpu.core_type<tc>, window_params = [{transform_indices = @transform_0, window_bounds = array<i64: 16, 32>}, {pipeline_mode = #tpu.pipeline_mode<synchronous>, transform_indices = @transform_1, window_bounds = array<i64: 1, 32>}, {pipeline_mode = #tpu.pipeline_mode<synchronous>, transform_indices = @transform_2, window_bounds = array<i64: 1, 32>}, {transform_indices = @transform_3, window_bounds = array<i64: 16, 32>}]} {
    %c0 = arith.constant 0 : index
    %c0_0 = arith.constant 0 : index
    %0 = vector.load %arg1[%c0, %c0_0] : memref<16x32xf32, #tpu.memory_space<vmem>>, vector<16x32xf32>
    %c0_1 = arith.constant 0 : index
    %c0_2 = arith.constant 0 : index
    %1 = vector.load %arg2[%c0_1, %c0_2] : memref<1x32xf32, #tpu.memory_space<vmem>>, vector<1x32xf32>
    %c0_3 = arith.constant 0 : index
    %c0_4 = arith.constant 0 : index
    %2 = vector.load %arg3[%c0_3, %c0_4] : memref<1x32xf32, #tpu.memory_space<vmem>>, vector<1x32xf32>
    %cst = arith.constant dense<0.000000e+00> : vector<16xf32>
    %3 = vector.multi_reduction <add>, %0, %cst [1] : vector<16x32xf32> to vector<16xf32>
    %4 = vector.shape_cast %3 : vector<16xf32> to vector<16x1xf32>
    %cst_5 = arith.constant 3.200000e+01 : f32
    %5 = vector.broadcast %cst_5 : f32 to vector<16x1xf32>
    %6 = arith.divf %4, %5 : vector<16x1xf32>
    %7 = vector.broadcast %6 : vector<16x1xf32> to vector<16x32xf32>
    %8 = arith.subf %0, %7 : vector<16x32xf32>
    %9 = arith.mulf %8, %8 : vector<16x32xf32>
    %cst_6 = arith.constant dense<0.000000e+00> : vector<16xf32>
    %10 = vector.multi_reduction <add>, %9, %cst_6 [1] : vector<16x32xf32> to vector<16xf32>
    %11 = vector.shape_cast %10 : vector<16xf32> to vector<16x1xf32>
    %cst_7 = arith.constant 3.200000e+01 : f32
    %12 = vector.broadcast %cst_7 : f32 to vector<16x1xf32>
    %13 = arith.divf %11, %12 : vector<16x1xf32>
    %cst_8 = arith.constant 9.99999996E-13 : f32
    %14 = vector.broadcast %cst_8 : f32 to vector<16x1xf32>
    %15 = arith.addf %13, %14 : vector<16x1xf32>
    %16 = math.rsqrt %15 : vector<16x1xf32>
    %17 = vector.broadcast %16 : vector<16x1xf32> to vector<16x32xf32>
    %18 = arith.mulf %8, %17 : vector<16x32xf32>
    %19 = vector.broadcast %1 : vector<1x32xf32> to vector<16x32xf32>
    %20 = arith.mulf %18, %19 : vector<16x32xf32>
    %21 = vector.broadcast %2 : vector<1x32xf32> to vector<16x32xf32>
    %22 = arith.addf %20, %21 : vector<16x32xf32>
    %c0_9 = arith.constant 0 : index
    %c0_10 = arith.constant 0 : index
    %23 = vector.load %arg4[%c0_9, %c0_10] : memref<16x32xf32, #tpu.memory_space<vmem>>, vector<16x32xf32>
    tpu.vector_store %arg4[%c0_9, %c0_10], %22 {strides = array<i32>} : memref<16x32xf32, #tpu.memory_space<vmem>>, vector<16x32xf32>,
    return
  }
  func.func @transform_0(%arg0: i32) -> (i32, i32) {
    %c0_i32 = arith.constant 0 : i32
    %c0_i32_0 = arith.constant 0 : i32
    return %arg0, %c0_i32 : i32, i32
  }
  func.func @transform_1(%arg0: i32) -> (i32, i32) {
    %c0_i32 = arith.constant 0 : i32
    %c0_i32_0 = arith.constant 0 : i32
    %c0_i32_1 = arith.constant 0 : i32
    return %c0_i32, %c0_i32_0 : i32, i32
  }
  func.func @transform_2(%arg0: i32) -> (i32, i32) {
    %c0_i32 = arith.constant 0 : i32
    %c0_i32_0 = arith.constant 0 : i32
    %c0_i32_1 = arith.constant 0 : i32
    return %c0_i32, %c0_i32_0 : i32, i32
  }
  func.func @transform_3(%arg0: i32) -> (i32, i32) {
    %c0_i32 = arith.constant 0 : i32
    %c0_i32_0 = arith.constant 0 : i32
    return %arg0, %c0_i32 : i32, i32
  }
}

</mosaic_0001>

<llo_original>
// kernel: tpu_custom_call.1
$region0: #{tpu_custom_call.1}
  #allocation0 [shape = 'u32[]', space=smem, size = 0x4, offset = 0x4, fixed_abs, tag = 'smem constant byte address 0x4 - core index']
  #allocation1 [shape = 'u32[144,128]{1,0:T(1,128)}', space=vmem, size = 0x12000, scoped, tag = 'internal scratch']
  %s0 = inlined_call_operand.hbm [shape: f32[16,32], index: 0, kind: input, shape index: {}]
  %s1 = inlined_call_operand.vmem [shape: f32[1,32], index: 1, kind: input, shape index: {}]
  %s2 = inlined_call_operand.vmem [shape: f32[1,32], index: 2, kind: input, shape index: {}]
  %s3 = inlined_call_operand.hbm [shape: f32[16,32], index: 3, kind: output, shape index: {}]
  %s4 = sld [smem:[#allocation0]]
  $region26: #{tpu_custom_call.1} parent=0
    _
  %s6 = ssub.s32 1, %s4
  %s7 = scalar_select 0, %s6, %s4
  $region1: #{tpu_custom_call.1} parent=0
    #allocation2 [shape = 'u8[8192]{0}', space=vmem, size = 0x2000, scoped, tag = 'input window, operand 0, single buffered']
    #allocation3 [shape = 's32[1]{0}', space=sflag, size = 0x4, scoped, tag = 'scoped memory for tpu_custom_call.1']
    #allocation4 [shape = 's32[1]{0}', space=sflag, size = 0x4, scoped, tag = 'scoped memory for tpu_custom_call.1']
    #allocation5 [shape = 'u8[8192]{0}', space=vmem, size = 0x2000, scoped, tag = 'output window, operand 0, single buffered']
    %8 = vsyncpa [#allocation3], 0
    %9 = vsyncpa [#allocation4], 0
    // Predicated region
    $region2: #{tpu_custom_call.1} parent=1 // pred_check
      _
    $region3: #{tpu_custom_call.1} parent=1 // pred_check_branch
      %11 = sbr.rel (0) target = $region5
    $region4: #{tpu_custom_call.1} parent=1 // pred_region
      %s13 = ssub.s32 256, 256
      %14 = vsyncadd [#allocation3], %s13
      %s15 = sshll.u32 [#allocation2], 4
      %s16 = int_to_ptr.vmem [resolvable:$true] %s15
      %21 = dma.hbm_to_vmem [thread:$0]  %s0, 256, %s16, [#allocation3], 128, 128, 8
    $region5: #{tpu_custom_call.1} parent=1 // pred_fallthru
      _
    // Predicated region
    $region6: #{tpu_custom_call.1} parent=1 // pred_check
      _
    $region7: #{tpu_custom_call.1} parent=1 // pred_check_branch
      %23 = sbr.rel (0) target = $region9
    $region8: #{tpu_custom_call.1} parent=1 // pred_region
      _
    $region9: #{tpu_custom_call.1} parent=1 // pred_fallthru
      _
    // Predicated region
    $region10: #{tpu_custom_call.1} parent=1 // pred_check
      _
    $region11: #{tpu_custom_call.1} parent=1 // pred_check_branch
      %25 = sbr.rel (0) target = $region13
    $region12: #{tpu_custom_call.1} parent=1 // pred_region
      _
    $region13: #{tpu_custom_call.1} parent=1 // pred_fallthru
      _
    // Predicated region
    $region14: #{tpu_custom_call.1} parent=1 // pred_check
      _
    $region15: #{tpu_custom_call.1} parent=1 // pred_check_branch
      %27 = sbr.rel (0) target = $region17
    $region16: #{tpu_custom_call.1} parent=1 // pred_region
      %28 = dma.done [#allocation3], 256
    $region17: #{tpu_custom_call.1} parent=1 // pred_fallthru
      _
    %v29 = vld [vmem:[#allocation2] sm:$0xff]
    %v30 = vld [vmem:[#allocation2 + $0x8] sm:$0xff]
    %v31 = vld [vmem:[%s1] sm:$0x1]
    %v32 = vld [vmem:[%s2] sm:$0x1]
    %vm33 = vcmask 261120
    %v34 = vsel %vm33, %v29, 0.0
    %35 = vadd.xlane.f32.xlu0 %v34
    %v36 = vpop.xlane.xlu0 %35
    %v37 = vsel %vm33, %v30, 0.0
    %38 = vadd.xlane.f32.xlu0 %v37
    %v39 = vpop.xlane.xlu0 %38
    %v40 = vrcp.pop 32.0
    %v41 = vmul.f32 %v36, %v40
    %v42 = vmul.f32 %v39, %v40
    %v43 = vsub.f32 %v29, %v41
    %v44 = vsub.f32 %v30, %v42
    %v45 = vmul.f32 %v43, %v43
    %v46 = vmul.f32 %v44, %v44
    %v47 = vsel %vm33, %v45, 0.0
    %48 = vadd.xlane.f32.xlu0 %v47
    %v49 = vpop.xlane.xlu0 %48
    %v50 = vsel %vm33, %v46, 0.0
    %51 = vadd.xlane.f32.xlu0 %v50
    %v52 = vpop.xlane.xlu0 %51
    %v53 = vmul.f32 %v49, %v40
    %v54 = vmul.f32 %v52, %v40
    %v55 = vadd.f32 %v53, 1e-12
    %v56 = vadd.f32 %v54, 1e-12
    %v57 = vrsqrt.pop %v55
    %v58 = vrsqrt.pop %v56
    %v59 = vmul.f32 %v43, %v57
    %v60 = vmul.f32 %v44, %v58
    %v62 = vlaneseq
    %v63 = vshrl.u32 %v62, 7
    %v64 = vsub.s32 0, %v63
    %v65 = vrot.slane %v31, %v64
    %v67 = vmul.f32 %v59, %v65
    %v68 = vmul.f32 %v60, %v65
    %v70 = vlaneseq
    %v71 = vshrl.u32 %v70, 7
    %v72 = vsub.s32 0, %v71
    %v73 = vrot.slane %v32, %v72
    %v75 = vadd.f32 %v67, %v73
    %v76 = vadd.f32 %v68, %v73
    %77 = vst.msk [vmem:[#allocation5] sm:$0xff] %vm33, %v75
    %78 = vst.msk [vmem:[#allocation5 + $0x8] sm:$0xff] %vm33, %v76
    // Predicated region
    $region18: #{tpu_custom_call.1} parent=1 // pred_check
      _
    $region19: #{tpu_custom_call.1} parent=1 // pred_check_branch
      %80 = sbr.rel (0) target = $region21
    $region20: #{tpu_custom_call.1} parent=1 // pred_region
      %s82 = ssub.s32 256, 256
      %83 = vsyncadd [#allocation4], %s82
      %s84 = sshll.u32 [#allocation5], 4
      %s85 = int_to_ptr.vmem [resolvable:$true] %s84
      %90 = dma.vmem_to_hbm [thread:$0]  %s85, 256, %s3, [#allocation4], 128, 128, 8
    $region21: #{tpu_custom_call.1} parent=1 // pred_fallthru
      _
    // Predicated region
    $region22: #{tpu_custom_call.1} parent=1 // pred_check
      _
    $region23: #{tpu_custom_call.1} parent=1 // pred_check_branch
      %92 = sbr.rel (0) target = $region25
    $region24: #{tpu_custom_call.1} parent=1 // pred_region
      %93 = dma.done [#allocation4], 256
    $region25: #{tpu_custom_call.1} parent=1 // pred_fallthru
      _
    %94 = vsyncpa [#allocation3], 1
    %95 = vsyncpa [#allocation4], 1

</llo_original>
